<compile_context>
chip_gen: v7x
topology: tpu7x:2x2x1
jax: 0.10.0
libtpu: 0.0.40
codegen_flags: <defaults>
</compile_context>

<pallas_src>
import jax
import jax.numpy as jnp
from jax import lax
from jax.experimental import pallas as pl
from jax.experimental.pallas import tpu as pltpu
import numpy as np


# ----------------------------------------------------------------------------- kernel

def _make_upsample_kernel(nb, H, HP):
    # Rows fed to the MXU: covers every valid output row of the nb batches in this
    # block (inter-batch pad rows produce garbage rows that are simply never stored).
    R = (nb - 1) * HP + H

    def kernel(x_ref, w_ref, o_ref):
        # x_ref: (nb*HP, Cin*W)       H-padded, lane-dense input rows
        # w_ref: (3, Cin*W, C*r*W*r)  per-vertical-tap packed conv + pixelshuffle weight
        # o_ref: (nb*H, C*r*W*r)      lane-dense output rows
        #
        # Three MXU matmuls, one per vertical tap dh; the dh row shift is a
        # sublane-offset view of x_ref — no scratch, no in-kernel shuffles.
        y = jnp.dot(x_ref[0:R, :], w_ref[0], preferred_element_type=jnp.float32)
        y = y + jnp.dot(x_ref[1:R + 1, :], w_ref[1], preferred_element_type=jnp.float32)
        y = y + jnp.dot(x_ref[2:R + 2, :], w_ref[2], preferred_element_type=jnp.float32)
        y = y.astype(o_ref.dtype)
        # Drop the inter-batch pad rows; every store is (H, 256+) — unmasked, lane-dense.
        for j in range(nb):
            o_ref[j * H:(j + 1) * H, :] = y[j * HP:j * HP + H, :]

    return kernel


# ----------------------------------------------------------------------------- packing

def pack_upsample_weight(w_oihw, W, scale):
    """Fold the 3x3 conv weight (OIHW, bias=False), the horizontal taps/padding, and
    PixelShuffle(scale) into three per-vertical-tap matmul RHS matrices:
        rhs[dh, ci*W + wi, ((cc*r + dr)*W + w)*r + dc] = w[cc*r*r + dr*r + dc, ci, dh, dw]
    with wi = w + dw - 1 (out-of-range wi omitted == SAME padding in W)."""
    w_np = np.asarray(jax.device_get(w_oihw), dtype=np.float32)
    Cout, Cin, KH, KW = w_np.shape
    assert (KH, KW) == (3, 3), "packing assumes a 3x3 kernel"
    r = scale
    assert Cout % (r * r) == 0, "PixelShuffle needs Cout divisible by scale^2"
    C = Cout // (r * r)
    K1, L = Cin * W, C * r * W * r

    dh, co, ci, dw, w = np.meshgrid(np.arange(KH), np.arange(Cout), np.arange(Cin),
                                    np.arange(KW), np.arange(W), indexing="ij")
    wi = w + dw - 1
    valid = (wi >= 0) & (wi < W)
    cc, dr, dc = co // (r * r), (co // r) % r, co % r        # PyTorch PixelShuffle order
    k = ci * W + wi
    l = ((cc * r + dr) * W + w) * r + dc
    rhs = np.zeros((KH, K1, L), dtype=np.float32)
    rhs[dh[valid], k[valid], l[valid]] = w_np[co[valid], ci[valid], dh[valid], dw[valid]]
    return jnp.asarray(rhs)


# ----------------------------------------------------------------------------- wrapper

def _round_up(a, b):
    return ((a + b - 1) // b) * b


def _sublane_align(dtype):
    return {2: 16, 1: 32}.get(np.dtype(dtype).itemsize, 8)


def _pick_batch_block(N, H, HP, compute_dtype):
    # Dtype-aware MXU row cap (review: raise toward 128 f32 / 256 bf16), while keeping
    # >= 2 grid steps when possible so v7x can shard the grid over its 2 TensorCores.
    row_cap = 256 if np.dtype(compute_dtype).itemsize == 2 else 128
    ok = [d for d in range(1, N + 1)
          if N % d == 0
          and ((d * H) % 8 == 0 or d == N)          # output block sublane alignment
          and (d * HP <= row_cap or d == 1)]
    two_plus = [d for d in ok if N // d >= 2]
    return max(two_plus) if two_plus else max(ok)


def upsample_pallas(x_nchw, w_packed, c_final, scale, *, compute_dtype=jnp.float32, nb=None):
    N, Cin, H, W = x_nchw.shape
    r = scale
    K1 = Cin * W
    L = c_final * r * W * r
    assert w_packed.shape == (3, K1, L), w_packed.shape

    align = _sublane_align(compute_dtype)
    HP = _round_up(H + 2, align)                    # per-batch padded row stride
    if nb is None:
        nb = _pick_batch_block(N, H, HP, compute_dtype)
    grid = N // nb
    out_dtype = x_nchw.dtype

    # Lane-dense, H-zero-padded input slab: x2[b*HP + 1 + h, ci*W + wi] = x[b, ci, h, wi].
    xt = jnp.transpose(x_nchw, (0, 2, 1, 3)).reshape(N, H, K1).astype(compute_dtype)
    x2 = jnp.pad(xt, ((0, 0), (1, HP - 1 - H), (0, 0))).reshape(N * HP, K1)
    w_packed = w_packed.astype(compute_dtype)

    R = (nb - 1) * HP + H
    itemsize = np.dtype(compute_dtype).itemsize
    cost = pl.CostEstimate(
        flops=int(2 * 3 * R * K1 * L * grid),
        transcendentals=0,
        bytes_accessed=int((N * HP * K1 + 3 * K1 * L) * itemsize
                           + N * H * L * np.dtype(out_dtype).itemsize),
    )

    out2 = pl.pallas_call(
        _make_upsample_kernel(nb, H, HP),
        out_shape=jax.ShapeDtypeStruct((N * H, L), out_dtype),
        grid_spec=pltpu.PrefetchScalarGridSpec(
            num_scalar_prefetch=0,
            grid=(grid,),
            in_specs=[
                pl.BlockSpec((nb * HP, K1), lambda i: (i, 0)),
                pl.BlockSpec((3, K1, L), lambda i: (0, 0, 0)),   # constant across grid
            ],
            out_specs=pl.BlockSpec((nb * H, L), lambda i: (i, 0)),
        ),
        compiler_params=pltpu.CompilerParams(
            dimension_semantics=("parallel",),
            vmem_limit_bytes=32 * 1024 * 1024,
        ),
        cost_estimate=cost,
    )(x2, w_packed)

    # Columns are ordered (cc, dr, w, dc): one small XLA transpose gives NCHW with the
    # pixel shuffle already applied.
    out = out2.reshape(N, H, c_final, r, W, r)
    out = jnp.transpose(out, (0, 2, 1, 3, 4, 5)).reshape(N, c_final, H * r, W * r)
    return out


class Upsample:
    """JAX/Pallas equivalent of the PyTorch Upsample module (Conv3x3 no-bias + PixelShuffle)."""

    def __init__(self, n_feat, scale, key, compute_dtype=jnp.float32):
        self.scale = scale
        self.compute_dtype = compute_dtype
        cout = n_feat * scale * 2
        assert cout % (scale * scale) == 0, "PixelShuffle needs Cout divisible by scale^2"
        self.c_final = cout // (scale * scale)
        fan_in = n_feat * 3 * 3
        bound = 1.0 / np.sqrt(fan_in)   # PyTorch-like kaiming-uniform bound, deterministic
        self.w_oihw = jax.random.uniform(key, (cout, n_feat, 3, 3),
                                         minval=-bound, maxval=bound, dtype=jnp.float32)
        self._packed = {}               # packed weight depends on spatial width W

    def __call__(self, x_nchw):
        N, Cin, H, W = x_nchw.shape
        if W not in self._packed:
            self._packed[W] = pack_upsample_weight(self.w_oihw, W, self.scale)
        return upsample_pallas(x_nchw, self._packed[W], self.c_final, self.scale,
                               compute_dtype=self.compute_dtype)


# ----------------------------------------------------------------------------- reference

def pixel_shuffle_nchw(x_nchw, r):
    N, Crr, H, W = x_nchw.shape
    C = Crr // (r * r)
    x = x_nchw.reshape(N, C, r, r, H, W)
    x = jnp.transpose(x, (0, 1, 4, 2, 5, 3))
    return x.reshape(N, C, H * r, W * r)


def _reference_forward(x_nchw, w_oihw, scale):
    y = lax.conv_general_dilated(
        x_nchw, w_oihw, window_strides=(1, 1), padding=((1, 1), (1, 1)),
        dimension_numbers=("NCHW", "OIHW", "NCHW"))
    return pixel_shuffle_nchw(y, scale)


# ----------------------------------------------------------------------------- main

if __name__ == "__main__":
    key = jax.random.PRNGKey(0)
    kx, kw = jax.random.split(key)

    n_feat, scale = 4, 2
    N, H, W = 2, 16, 16
    x = jax.random.normal(kx, (N, n_feat, H, W), dtype=jnp.float32)  # NCHW

    c_final = n_feat * scale * 2 // (scale * scale)

    # f32 operand path (exact check vs the XLA conv reference).
    model = Upsample(n_feat, scale, kw, compute_dtype=jnp.float32)
    out = jax.block_until_ready(model(x))
    assert out.shape == (N, c_final, H * scale, W * scale), out.shape
    ref = jax.block_until_ready(_reference_forward(x, model.w_oihw, scale))
    np.testing.assert_allclose(np.asarray(out), np.asarray(ref), rtol=1e-5, atol=5e-5)

    # bf16 operand path (v6e/v7x MXU-native; f32 accumulation) — looser tolerance.
    model_bf16 = Upsample(n_feat, scale, kw, compute_dtype=jnp.bfloat16)
    out_bf16 = jax.block_until_ready(model_bf16(x))
    np.testing.assert_allclose(np.asarray(out_bf16), np.asarray(ref), rtol=3e-2, atol=3e-2)

    print("KERNEL_OK")
</pallas_src>

<mosaic_0001>
module attributes {stable_mosaic.version = 11 : i64} {
  func.func @kernel(%arg0: i32, %arg1: memref<24x64xf32, #tpu.memory_space<vmem>>, %arg2: memref<3x64x256xf32, #tpu.memory_space<vmem>>, %arg3: memref<16x256xf32, #tpu.memory_space<vmem>>) attributes {dimension_semantics = [#tpu.dimension_semantics<parallel>], iteration_bounds = array<i64: 2>, scalar_prefetch = 0 : i64, scratch_operands = 0 : i64, tpu.core_type = #tpu.core_type<tc>, window_params = [{transform_indices = @transform_0, window_bounds = array<i64: 24, 64>}, {pipeline_mode = #tpu.pipeline_mode<synchronous>, transform_indices = @transform_1, window_bounds = array<i64: 3, 64, 256>}, {transform_indices = @transform_2, window_bounds = array<i64: 16, 256>}]} {
    %c0 = arith.constant 0 : index
    %c0_0 = arith.constant 0 : index
    %0 = vector.load %arg1[%c0, %c0_0] : memref<24x64xf32, #tpu.memory_space<vmem>>, vector<16x64xf32>
    %c0_1 = arith.constant 0 : index
    %c0_2 = arith.constant 0 : index
    %c0_3 = arith.constant 0 : index
    %1 = vector.load %arg2[%c0_1, %c0_2, %c0_3] : memref<3x64x256xf32, #tpu.memory_space<vmem>>, vector<1x64x256xf32>
    %2 = vector.shape_cast %1 : vector<1x64x256xf32> to vector<64x256xf32>
    %cst = arith.constant dense<0.000000e+00> : vector<16x256xf32>
    %3 = tpu.matmul %0, %2, %cst {dimension_numbers = #tpu.dot_dimension_numbers<[1], [0], [0], [1], [0, 0, 1, 1], [], []>} : vector<16x64xf32>, vector<64x256xf32>, vector<16x256xf32> -> vector<16x256xf32>
    %c1 = arith.constant 1 : index
    %c0_4 = arith.constant 0 : index
    %4 = vector.load %arg1[%c1, %c0_4] : memref<24x64xf32, #tpu.memory_space<vmem>>, vector<16x64xf32>
    %c1_5 = arith.constant 1 : index
    %c0_6 = arith.constant 0 : index
    %c0_7 = arith.constant 0 : index
    %5 = vector.load %arg2[%c1_5, %c0_6, %c0_7] : memref<3x64x256xf32, #tpu.memory_space<vmem>>, vector<1x64x256xf32>
    %6 = vector.shape_cast %5 : vector<1x64x256xf32> to vector<64x256xf32>
    %cst_8 = arith.constant dense<0.000000e+00> : vector<16x256xf32>
    %7 = tpu.matmul %4, %6, %cst_8 {dimension_numbers = #tpu.dot_dimension_numbers<[1], [0], [0], [1], [0, 0, 1, 1], [], []>} : vector<16x64xf32>, vector<64x256xf32>, vector<16x256xf32> -> vector<16x256xf32>
    %8 = arith.addf %3, %7 : vector<16x256xf32>
    %c2 = arith.constant 2 : index
    %c0_9 = arith.constant 0 : index
    %9 = vector.load %arg1[%c2, %c0_9] : memref<24x64xf32, #tpu.memory_space<vmem>>, vector<16x64xf32>
    %c2_10 = arith.constant 2 : index
    %c0_11 = arith.constant 0 : index
    %c0_12 = arith.constant 0 : index
    %10 = vector.load %arg2[%c2_10, %c0_11, %c0_12] : memref<3x64x256xf32, #tpu.memory_space<vmem>>, vector<1x64x256xf32>
    %11 = vector.shape_cast %10 : vector<1x64x256xf32> to vector<64x256xf32>
    %cst_13 = arith.constant dense<0.000000e+00> : vector<16x256xf32>
    %12 = tpu.matmul %9, %11, %cst_13 {dimension_numbers = #tpu.dot_dimension_numbers<[1], [0], [0], [1], [0, 0, 1, 1], [], []>} : vector<16x64xf32>, vector<64x256xf32>, vector<16x256xf32> -> vector<16x256xf32>
    %13 = arith.addf %8, %12 : vector<16x256xf32>
    %c0_14 = arith.constant 0 : index
    %c0_15 = arith.constant 0 : index
    %14 = vector.load %arg3[%c0_14, %c0_15] : memref<16x256xf32, #tpu.memory_space<vmem>>, vector<16x256xf32>
    tpu.vector_store %arg3[%c0_14, %c0_15], %13 {strides = array<i32>} : memref<16x256xf32, #tpu.memory_space<vmem>>, vector<16x256xf32>,
    return
  }
  func.func @transform_0(%arg0: i32) -> (i32, i32) {
    %c0_i32 = arith.constant 0 : i32
    %c0_i32_0 = arith.constant 0 : i32
    return %arg0, %c0_i32 : i32, i32
  }
  func.func @transform_1(%arg0: i32) -> (i32, i32, i32) {
    %c0_i32 = arith.constant 0 : i32
    %c0_i32_0 = arith.constant 0 : i32
    %c0_i32_1 = arith.constant 0 : i32
    %c0_i32_2 = arith.constant 0 : i32
    return %c0_i32, %c0_i32_0, %c0_i32_1 : i32, i32, i32
  }
  func.func @transform_2(%arg0: i32) -> (i32, i32) {
    %c0_i32 = arith.constant 0 : i32
    %c0_i32_0 = arith.constant 0 : i32
    return %arg0, %c0_i32 : i32, i32
  }
}

</mosaic_0001>

<llo_original>
// kernel: tpu_custom_call.1
$region0: #{tpu_custom_call.1}
  #allocation0 [shape = 'u32[]', space=smem, size = 0x4, offset = 0x4, fixed_abs, tag = 'smem constant byte address 0x4 - core index']
  #allocation1 [shape = 'u32[144,128]{1,0:T(1,128)}', space=vmem, size = 0x12000, scoped, tag = 'internal scratch']
  %s0 = inlined_call_operand.hbm [shape: f32[48,64], index: 0, kind: input, shape index: {}]
  %s1 = inlined_call_operand.hbm [shape: f32[3,64,256], index: 1, kind: input, shape index: {}]
  %s2 = inlined_call_operand.hbm [shape: f32[32,256], index: 2, kind: output, shape index: {}]
  %s3 = sld [smem:[#allocation0]]
  $region49: #{tpu_custom_call.1} parent=0
    _
  %s5 = ssub.s32 1, %s3
  %s6 = scalar_select 0, %s5, %s3
  $region1: #{tpu_custom_call.1} parent=0
    #allocation2 [shape = 'u8[24576]{0}', space=vmem, size = 0x6000, scoped, tag = 'input window, operand 0']
    #allocation3 [shape = 's32[2]{0}', space=sflag, size = 0x8, scoped, tag = 'scoped memory for tpu_custom_call.1']
    #allocation4 [shape = 's32[2]{0}', space=sflag, size = 0x8, scoped, tag = 'scoped memory for tpu_custom_call.1']
    #allocation5 [shape = 'u8[196608]{0}', space=vmem, size = 0x30000, scoped, tag = 'input window, operand 1, single buffered']
    #allocation6 [shape = 's32[1]{0}', space=sflag, size = 0x4, scoped, tag = 'scoped memory for tpu_custom_call.1']
    #allocation7 [shape = 'u8[32768]{0}', space=vmem, size = 0x8000, scoped, tag = 'output window, operand 0']
    %7 = vsyncpa [#allocation3], 0
    %s8 = scalar_lea.sflag [#allocation3], 1
    %9 = vsyncpa %s8, 0
    %10 = vsyncpa [#allocation6], 0
    %11 = vsyncpa [#allocation4], 0
    %s12 = scalar_lea.sflag [#allocation4], 1
    %13 = vsyncpa %s12, 0
    loop: start=0, step=1, limit=4
    $region2: #{tpu_custom_call.1} parent=1 // loop_pre_header
      _
    $region3: #{tpu_custom_call.1} parent=1 // loop_header
      %s15 = sphi 0, %s19
      %p16 = scmp.ge.s32.totalorder %s15, 4
      %s25 = sphi 0, %s27
      %s28 = sphi 0, %s25
      %s29 = sphi 0, %s28
      %s45 = sphi 0, %s29
      %s49 = sphi 0, %s49
      %s51 = sphi 0, %s49
      %s52 = sphi 0, %s51
      %s66 = sphi 0, %s52
      %s72 = sphi 0, %s74
      %s75 = sphi 0, %s72
      %s76 = sphi 0, %s75
      %s92 = sphi 0, %s76
    $region4: #{tpu_custom_call.1} parent=1 // loop_header_branch
      %18 = sbr.rel (%p16) target = $region8
    $region5: #{tpu_custom_call.1} parent=1 // loop_body
      %s20 = ssub.s32 %s15, 1
      %s21 = ssub.s32 %s15, 2
      %s22 = sadd.s32 %s15, 1
      %s23 = ssub.s32 %s15, %s22
      %p24 = scmp.eq.s32.totalorder %s23, 0
      %s26 = sadd.s32 %s25, 1
      %s27 = scalar_select %p24, %s25, %s26
      %p30 = pneg %p24
      %p31 = scmp.eq.s32.totalorder %s15, 1
      %p32 = por %p30, %p31
      %p33 = scmp.ne.s32.totalorder %s25, %s28
      %p34 = scmp.eq.s32.totalorder %s15, 0
      %p35 = por %p33, %p34
      %p36 = scmp.ne.s32.totalorder %s25, %s28
      %p37 = scmp.eq.s32.totalorder %s20, 1
      %p38 = por %p36, %p37
      %p39 = scmp.ne.s32.totalorder %s28, %s29
      %p40 = scmp.eq.s32.totalorder %s20, 0
      %p41 = por %p39, %p40
      %p42 = scmp.ne.s32.totalorder %s28, %s29
      %p43 = scmp.eq.s32.totalorder %s21, 1
      %p44 = por %p42, %p43
      %p46 = scmp.ne.s32.totalorder %s29, %s45
      %p47 = scmp.eq.s32.totalorder %s21, 0
      %p48 = por %p46, %p47
      %s50 = sadd.s32 %s49, 1
      %p53 = scmp.eq.s32.totalorder %s15, 1
      %p54 = scmp.ne.s32.totalorder %s49, %s51
      %p55 = scmp.eq.s32.totalorder %s15, 0
      %p56 = por %p54, %p55
      %p57 = scmp.ne.s32.totalorder %s49, %s51
      %p58 = scmp.eq.s32.totalorder %s20, 1
      %p59 = por %p57, %p58
      %p60 = scmp.ne.s32.totalorder %s51, %s52
      %p61 = scmp.eq.s32.totalorder %s20, 0
      %p62 = por %p60, %p61
      %p63 = scmp.ne.s32.totalorder %s51, %s52
      %p64 = scmp.eq.s32.totalorder %s21, 1
      %p65 = por %p63, %p64
      %p67 = scmp.ne.s32.totalorder %s52, %s66
      %p68 = scmp.eq.s32.totalorder %s21, 0
      %p69 = por %p67, %p68
      %s70 = ssub.s32 %s15, %s22
      %p71 = scmp.eq.s32.totalorder %s70, 0
      %s73 = sadd.s32 %s72, 1
      %s74 = scalar_select %p71, %s72, %s73
      %p77 = pneg %p71
      %p78 = scmp.eq.s32.totalorder %s15, 1
      %p79 = por %p77, %p78
      %p80 = scmp.ne.s32.totalorder %s72, %s75
      %p81 = scmp.eq.s32.totalorder %s15, 0
      %p82 = por %p80, %p81
      %p83 = scmp.ne.s32.totalorder %s72, %s75
      %p84 = scmp.eq.s32.totalorder %s20, 1
      %p85 = por %p83, %p84
      %p86 = scmp.ne.s32.totalorder %s75, %s76
      %p87 = scmp.eq.s32.totalorder %s20, 0
      %p88 = por %p86, %p87
      %p89 = scmp.ne.s32.totalorder %s75, %s76
      %p90 = scmp.eq.s32.totalorder %s21, 1
      %p91 = por %p89, %p90
      %p93 = scmp.ne.s32.totalorder %s76, %s92
      %p94 = scmp.eq.s32.totalorder %s21, 0
      %p95 = por %p93, %p94
      %p96 = scmp.le.s32.totalorder 1, %s15
      %p97 = scmp.lt.s32.totalorder %s15, 3
      %p98 = pnand %p96, %p97
      %p99 = pneg %p98
      // Predicated region
      $region9: #{tpu_custom_call.1} parent=5 // pred_check
        _
      $region10: #{tpu_custom_call.1} parent=5 // pred_check_branch
        %101 = sbr.rel (%p98) target = $region12
      $region11: #{tpu_custom_call.1} parent=5 // pred_region
        %s102 = ssub.s32 %s15, 1
        // Predicated region
        $region13: #{tpu_custom_call.1} parent=11 // pred_check
          %p103 = pneg %p62
        $region14: #{tpu_custom_call.1} parent=11 // pred_check_branch
          %105 = sbr.rel (%p103) target = $region16
        $region15: #{tpu_custom_call.1} parent=11 // pred_region
          %s107 = ssub.s32 6144, 6144
          %108 = vsyncadd [#allocation6], %s107
          %s109 = sshll.u32 [#allocation5], 4
          %s110 = int_to_ptr.vmem [resolvable:$true] %s109
          %115 = dma.hbm_to_vmem [thread:$0]  %s1, 6144, %s110, [#allocation6], 256, 256, 16
        $region16: #{tpu_custom_call.1} parent=11 // pred_fallthru
          _
      $region12: #{tpu_custom_call.1} parent=5 // pred_fallthru
        _
      %p116 = scmp.lt.s32.totalorder %s15, 2
      // Predicated region
      $region17: #{tpu_custom_call.1} parent=5 // pred_check
        %p117 = pneg %p116
      $region18: #{tpu_custom_call.1} parent=5 // pred_check_branch
        %119 = sbr.rel (%p117) target = $region20
      $region19: #{tpu_custom_call.1} parent=5 // pred_region
        // Predicated region
        $region21: #{tpu_custom_call.1} parent=19 // pred_check
          %p120 = pneg %p35
        $region22: #{tpu_custom_call.1} parent=19 // pred_check_branch
          %122 = sbr.rel (%p120) target = $region24
        $region23: #{tpu_custom_call.1} parent=19 // pred_region
          %s123 = sand.u32 %s25, 1
          %s124 = scalar_lea.sflag [#allocation3], %s123
          %s125 = sand.u32 %s25, 1
          %s126 = smul.addr %s125, 24
          %s127 = scalar_lea.vmem [#allocation2], %s126
          %s128 = smul.u32 3, %s15
          %s130 = ssub.s32 384, 384
          %131 = vsyncadd %s124, %s130
          %s132 = smul.addr %s128, 128
          %s133 = scalar_lea.hbm %s0, %s132
          %s134 = sshll.u32 %s127, 4
          %s135 = int_to_ptr.vmem [resolvable:$true] %s134
          %140 = dma.hbm_to_vmem [thread:$0]  %s133, 384, %s135, %s124, 128, 128, 8
        $region24: #{tpu_custom_call.1} parent=19 // pred_fallthru
          _
      $region20: #{tpu_custom_call.1} parent=5 // pred_fallthru
        _
      %p141 = scmp.le.s32.totalorder 1, %s15
      %p142 = scmp.lt.s32.totalorder %s15, 3
      %p143 = pnand %p141, %p142
      %p144 = pneg %p143
      // Predicated region
      $region25: #{tpu_custom_call.1} parent=5 // pred_check
        _
      $region26: #{tpu_custom_call.1} parent=5 // pred_check_branch
        %146 = sbr.rel (%p143) target = $region28
      $region27: #{tpu_custom_call.1} parent=5 // pred_region
        %s147 = ssub.s32 %s15, 1
        %s148 = sand.u32 %s28, 1
        %s149 = scalar_lea.sflag [#allocation3], %s148
        %s150 = sand.u32 %s28, 1
        %s151 = smul.addr %s150, 24
        %s152 = scalar_lea.vmem [#allocation2], %s151
        // Predicated region
        $region29: #{tpu_custom_call.1} parent=27 // pred_check
          %p153 = pneg %p41
        $region30: #{tpu_custom_call.1} parent=27 // pred_check_branch
          %155 = sbr.rel (%p153) target = $region32
        $region31: #{tpu_custom_call.1} parent=27 // pred_region
          %156 = dma.done %s149, 384
        $region32: #{tpu_custom_call.1} parent=27 // pred_fallthru
          _
        // Predicated region
        $region33: #{tpu_custom_call.1} parent=27 // pred_check
          %p157 = pneg %p62
        $region34: #{tpu_custom_call.1} parent=27 // pred_check_branch
          %159 = sbr.rel (%p157) target = $region36
        $region35: #{tpu_custom_call.1} parent=27 // pred_region
          %160 = dma.done [#allocation6], 6144
        $region36: #{tpu_custom_call.1} parent=27 // pred_fallthru
          _
        %s161 = sand.u32 %s28, 1
        %s162 = scalar_lea.sflag [#allocation3], %s161
        %s163 = sand.u32 %s28, 1
        %s164 = smul.addr %s163, 24
        %s165 = scalar_lea.vmem [#allocation2], %s164
        %p166 = pneg %p41
        %p167 = pneg %p38
        %p168 = pneg %p62
        %p169 = pneg %p59
        %p170 = pneg %p88
        %p171 = pneg %p85
        %s172 = sand.u32 %s75, 1
        %s173 = scalar_lea.sflag [#allocation4], %s172
        %s174 = sand.u32 %s75, 1
        %s175 = smul.addr %s174, 32
        %s176 = scalar_lea.vmem [#allocation7], %s175
        %s177 = smul.u32 3, %s20
        %s178 = smul.u32 2, %s20
        %v179 = vld [vmem:[%s152] sm:$0xff]
        %v180 = vld [vmem:[%s152 + $0x8] sm:$0xff]
        %v181 = vld [vmem:[#allocation5] sm:$0xff]
        %v182 = vld [vmem:[#allocation5 + $0x8] sm:$0xff]
        %v183 = vld [vmem:[#allocation5 + $0x10] sm:$0xff]
        %v184 = vld [vmem:[#allocation5 + $0x18] sm:$0xff]
        %v185 = vld [vmem:[#allocation5 + $0x20] sm:$0xff]
        %v186 = vld [vmem:[#allocation5 + $0x28] sm:$0xff]
        %v187 = vld [vmem:[#allocation5 + $0x30] sm:$0xff]
        %v188 = vld [vmem:[#allocation5 + $0x38] sm:$0xff]
        %v189 = vld [vmem:[#allocation5 + $0x40] sm:$0xff]
        %v190 = vld [vmem:[#allocation5 + $0x48] sm:$0xff]
        %v191 = vld [vmem:[#allocation5 + $0x50] sm:$0xff]
        %v192 = vld [vmem:[#allocation5 + $0x58] sm:$0xff]
        %v193 = vld [vmem:[#allocation5 + $0x60] sm:$0xff]
        %v194 = vld [vmem:[#allocation5 + $0x68] sm:$0xff]
        %v195 = vld [vmem:[#allocation5 + $0x70] sm:$0xff]
        %v196 = vld [vmem:[#allocation5 + $0x78] sm:$0xff]
        %v197 = vld [vmem:[%s152 + $0x1] sm:$0xff]
        %v198 = vld [vmem:[%s152 + $0x9] sm:$0xff]
        %s199 = scalar_lea.vmem [#allocation5], 128
        %v200 = vld [vmem:[%s199] sm:$0xff]
        %v201 = vld [vmem:[%s199 + $0x8] sm:$0xff]
        %v202 = vld [vmem:[%s199 + $0x10] sm:$0xff]
        %v203 = vld [vmem:[%s199 + $0x18] sm:$0xff]
        %v204 = vld [vmem:[%s199 + $0x20] sm:$0xff]
        %v205 = vld [vmem:[%s199 + $0x28] sm:$0xff]
        %v206 = vld [vmem:[%s199 + $0x30] sm:$0xff]
        %v207 = vld [vmem:[%s199 + $0x38] sm:$0xff]
        %v208 = vld [vmem:[%s199 + $0x40] sm:$0xff]
        %v209 = vld [vmem:[%s199 + $0x48] sm:$0xff]
        %v210 = vld [vmem:[%s199 + $0x50] sm:$0xff]
        %v211 = vld [vmem:[%s199 + $0x58] sm:$0xff]
        %v212 = vld [vmem:[%s199 + $0x60] sm:$0xff]
        %v213 = vld [vmem:[%s199 + $0x68] sm:$0xff]
        %v214 = vld [vmem:[%s199 + $0x70] sm:$0xff]
        %v215 = vld [vmem:[%s199 + $0x78] sm:$0xff]
        %vm216 = vcmask 523264
        %v218 = vsel %vm216, %v197, 0
        %v221 = vsel %vm216, %v198, 0
        %223 = vmatprep.subr.mxu0 %v201
        %224 = vmatpush1.msra.mxu0 %v200
        %225 = vmatprep.subr.mxu0 %v203
        %226 = vmatpush1.msra.mxu0 %v202
        %227 = vmatprep.subr.mxu0 %v205
        %228 = vmatpush1.msra.mxu0 %v204
        %229 = vmatprep.subr.mxu0 %v207
        %230 = vmatpush1.msra.mxu0 %v206
        %231 = vmatprep.subr.mxu0 %v209
        %232 = vmatpush1.msra.mxu0 %v208
        %233 = vmatprep.subr.mxu0 %v211
        %234 = vmatpush1.msra.mxu0 %v210
        %235 = vmatprep.subr.mxu0 %v213
        %236 = vmatpush1.msra.mxu0 %v212
        %237 = vmatprep.subr.mxu0 %v215
        %238 = vmatpush1.msra.mxu0 %v214
        %239 = vmatprep.subr.mxu0 0.0
        %240 = vmatpush1.msra.mxu0 0.0
        %241 = vmatprep.subr.mxu0 0.0
        %242 = vmatpush1.msra.mxu0 0.0
        %243 = vmatprep.subr.mxu0 0.0
        %244 = vmatpush1.msra.mxu0 0.0
        %245 = vmatprep.subr.mxu0 0.0
        %246 = vmatpush1.msra.mxu0 0.0
        %247 = vmatprep.subr.mxu0 0.0
        %248 = vmatpush1.msra.mxu0 0.0
        %249 = vmatprep.subr.mxu0 0.0
        %250 = vmatpush1.msra.mxu0 0.0
        %251 = vmatprep.subr.mxu0 0.0
        %252 = vmatpush1.msra.mxu0 0.0
        %253 = vmatprep.subr.mxu0 0.0
        %254 = vmatpush1.msra.mxu0 0.0
        %255 = vmatprep.subr.mxu0 0.0
        %256 = vmatpush1.msra.mxu0 0.0
        %257 = vmatprep.subr.mxu0 0.0
        %258 = vmatpush1.msra.mxu0 0.0
        %259 = vmatprep.subr.mxu0 0.0
        %260 = vmatpush1.msra.mxu0 0.0
        %261 = vmatprep.subr.mxu0 0.0
        %262 = vmatpush1.msra.mxu0 0.0
        %263 = vmatprep.subr.mxu0 0.0
        %264 = vmatpush1.msra.mxu0 0.0
        %265 = vmatprep.subr.mxu0 0.0
        %266 = vmatpush1.msra.mxu0 0.0
        %267 = vmatprep.subr.mxu0 0.0
        %268 = vmatpush1.msra.mxu0 0.0
        %269 = vmatprep.subr.mxu0 0.0
        %270 = vmatpush1.msra.mxu0 0.0
        %271 = vmatprep.subr.mxu0 0.0
        %272 = vmatpush1.msra.mxu0 0.0
        %273 = vmatprep.subr.mxu0 0.0
        %274 = vmatpush1.msra.mxu0 0.0
        %275 = vmatprep.subr.mxu0 0.0
        %276 = vmatpush1.msra.mxu0 0.0
        %277 = vmatprep.subr.mxu0 0.0
        %278 = vmatpush1.msra.mxu0 0.0
        %279 = vmatprep.subr.mxu0 0.0
        %280 = vmatpush1.msra.mxu0 0.0
        %281 = vmatprep.subr.mxu0 0.0
        %282 = vmatpush1.msra.mxu0 0.0
        %283 = vmatprep.subr.mxu0 0.0
        %284 = vmatpush1.msra.mxu0 0.0
        %285 = vmatprep.subr.mxu0 0.0
        %286 = vmatpush1.msra.mxu0 0.0
        %287 = vmatprep.mubr.f32.mxu0 0.0
        %288 = vmatmul.mubr.f32.gmra.mrb[0].mxu0 %v218
        %v289 = vpop.f32.mrb[0].mxu0
        %v290 = vadd.f32 0.0, %v289
        %v291 = vpop.f32.mrb[0].mxu0
        %v292 = vadd.f32 0.0, %v291
        %293 = vmatprep.mubr.f32.mxu0 0.0
        %294 = vmatmul.mubr.f32.gmra.mrb[0].mxu0 %v221
        %v295 = vpop.f32.mrb[0].mxu0
        %v296 = vadd.f32 0.0, %v295
        %v297 = vpop.f32.mrb[0].mxu0
        %v298 = vadd.f32 0.0, %v297
        %299 = vdwg.mxu0
        %v301 = vsel %vm216, %v179, 0
        %v304 = vsel %vm216, %v180, 0
        %306 = vmatprep.subr.mxu0 %v182
        %307 = vmatpush1.msra.mxu0 %v181
        %308 = vmatprep.subr.mxu0 %v184
        %309 = vmatpush1.msra.mxu0 %v183
        %310 = vmatprep.subr.mxu0 %v186
        %311 = vmatpush1.msra.mxu0 %v185
        %312 = vmatprep.subr.mxu0 %v188
        %313 = vmatpush1.msra.mxu0 %v187
        %314 = vmatprep.subr.mxu0 %v190
        %315 = vmatpush1.msra.mxu0 %v189
        %316 = vmatprep.subr.mxu0 %v192
        %317 = vmatpush1.msra.mxu0 %v191
        %318 = vmatprep.subr.mxu0 %v194
        %319 = vmatpush1.msra.mxu0 %v193
        %320 = vmatprep.subr.mxu0 %v196
        %321 = vmatpush1.msra.mxu0 %v195
        %322 = vmatprep.subr.mxu0 0.0
        %323 = vmatpush1.msra.mxu0 0.0
        %324 = vmatprep.subr.mxu0 0.0
        %325 = vmatpush1.msra.mxu0 0.0
        %326 = vmatprep.subr.mxu0 0.0
        %327 = vmatpush1.msra.mxu0 0.0
        %328 = vmatprep.subr.mxu0 0.0
        %329 = vmatpush1.msra.mxu0 0.0
        %330 = vmatprep.subr.mxu0 0.0
        %331 = vmatpush1.msra.mxu0 0.0
        %332 = vmatprep.subr.mxu0 0.0
        %333 = vmatpush1.msra.mxu0 0.0
        %334 = vmatprep.subr.mxu0 0.0
        %335 = vmatpush1.msra.mxu0 0.0
        %336 = vmatprep.subr.mxu0 0.0
        %337 = vmatpush1.msra.mxu0 0.0
        %338 = vmatprep.subr.mxu0 0.0
        %339 = vmatpush1.msra.mxu0 0.0
        %340 = vmatprep.subr.mxu0 0.0
        %341 = vmatpush1.msra.mxu0 0.0
        %342 = vmatprep.subr.mxu0 0.0
        %343 = vmatpush1.msra.mxu0 0.0
        %344 = vmatprep.subr.mxu0 0.0
        %345 = vmatpush1.msra.mxu0 0.0
        %346 = vmatprep.subr.mxu0 0.0
        %347 = vmatpush1.msra.mxu0 0.0
        %348 = vmatprep.subr.mxu0 0.0
        %349 = vmatpush1.msra.mxu0 0.0
        %350 = vmatprep.subr.mxu0 0.0
        %351 = vmatpush1.msra.mxu0 0.0
        %352 = vmatprep.subr.mxu0 0.0
        %353 = vmatpush1.msra.mxu0 0.0
        %354 = vmatprep.subr.mxu0 0.0
        %355 = vmatpush1.msra.mxu0 0.0
        %356 = vmatprep.subr.mxu0 0.0
        %357 = vmatpush1.msra.mxu0 0.0
        %358 = vmatprep.subr.mxu0 0.0
        %359 = vmatpush1.msra.mxu0 0.0
        %360 = vmatprep.subr.mxu0 0.0
        %361 = vmatpush1.msra.mxu0 0.0
        %362 = vmatprep.subr.mxu0 0.0
        %363 = vmatpush1.msra.mxu0 0.0
        %364 = vmatprep.subr.mxu0 0.0
        %365 = vmatpush1.msra.mxu0 0.0
        %366 = vmatprep.subr.mxu0 0.0
        %367 = vmatpush1.msra.mxu0 0.0
        %368 = vmatprep.subr.mxu0 0.0
        %369 = vmatpush1.msra.mxu0 0.0
        %370 = vmatprep.mubr.f32.mxu0 0.0
        %371 = vmatmul.mubr.f32.gmra.mrb[0].mxu0 %v301
        %v372 = vpop.f32.mrb[0].mxu0
        %v373 = vadd.f32 %v290, %v372
        %v374 = vpop.f32.mrb[0].mxu0
        %v375 = vadd.f32 %v292, %v374
        %376 = vmatprep.mubr.f32.mxu0 0.0
        %377 = vmatmul.mubr.f32.gmra.mrb[0].mxu0 %v304
        %v378 = vpop.f32.mrb[0].mxu0
        %v379 = vadd.f32 %v296, %v378
        %v380 = vpop.f32.mrb[0].mxu0
        %v381 = vadd.f32 %v298, %v380
        %382 = vdwg.mxu0
        %v383 = vld [vmem:[%s152 + $0x2] sm:$0xff]
        %v384 = vld [vmem:[%s152 + $0xa] sm:$0xff]
        %s385 = scalar_lea.vmem [#allocation5], 256
        %v386 = vld [vmem:[%s385] sm:$0xff]
        %v387 = vld [vmem:[%s385 + $0x8] sm:$0xff]
        %v388 = vld [vmem:[%s385 + $0x10] sm:$0xff]
        %v389 = vld [vmem:[%s385 + $0x18] sm:$0xff]
        %v390 = vld [vmem:[%s385 + $0x20] sm:$0xff]
        %v391 = vld [vmem:[%s385 + $0x28] sm:$0xff]
        %v392 = vld [vmem:[%s385 + $0x30] sm:$0xff]
        %v393 = vld [vmem:[%s385 + $0x38] sm:$0xff]
        %v394 = vld [vmem:[%s385 + $0x40] sm:$0xff]
        %v395 = vld [vmem:[%s385 + $0x48] sm:$0xff]
        %v396 = vld [vmem:[%s385 + $0x50] sm:$0xff]
        %v397 = vld [vmem:[%s385 + $0x58] sm:$0xff]
        %v398 = vld [vmem:[%s385 + $0x60] sm:$0xff]
        %v399 = vld [vmem:[%s385 + $0x68] sm:$0xff]
        %v400 = vld [vmem:[%s385 + $0x70] sm:$0xff]
        %v401 = vld [vmem:[%s385 + $0x78] sm:$0xff]
        %v403 = vsel %vm216, %v383, 0
        %v406 = vsel %vm216, %v384, 0
        %408 = vmatprep.subr.mxu0 %v387
        %409 = vmatpush1.msra.mxu0 %v386
        %410 = vmatprep.subr.mxu0 %v389
        %411 = vmatpush1.msra.mxu0 %v388
        %412 = vmatprep.subr.mxu0 %v391
        %413 = vmatpush1.msra.mxu0 %v390
        %414 = vmatprep.subr.mxu0 %v393
        %415 = vmatpush1.msra.mxu0 %v392
        %416 = vmatprep.subr.mxu0 %v395
        %417 = vmatpush1.msra.mxu0 %v394
        %418 = vmatprep.subr.mxu0 %v397
        %419 = vmatpush1.msra.mxu0 %v396
        %420 = vmatprep.subr.mxu0 %v399
        %421 = vmatpush1.msra.mxu0 %v398
        %422 = vmatprep.subr.mxu0 %v401
        %423 = vmatpush1.msra.mxu0 %v400
        %424 = vmatprep.subr.mxu0 0.0
        %425 = vmatpush1.msra.mxu0 0.0
        %426 = vmatprep.subr.mxu0 0.0
        %427 = vmatpush1.msra.mxu0 0.0
        %428 = vmatprep.subr.mxu0 0.0
        %429 = vmatpush1.msra.mxu0 0.0
        %430 = vmatprep.subr.mxu0 0.0
        %431 = vmatpush1.msra.mxu0 0.0
        %432 = vmatprep.subr.mxu0 0.0
        %433 = vmatpush1.msra.mxu0 0.0
        %434 = vmatprep.subr.mxu0 0.0
        %435 = vmatpush1.msra.mxu0 0.0
        %436 = vmatprep.subr.mxu0 0.0
        %437 = vmatpush1.msra.mxu0 0.0
        %438 = vmatprep.subr.mxu0 0.0
        %439 = vmatpush1.msra.mxu0 0.0
        %440 = vmatprep.subr.mxu0 0.0
        %441 = vmatpush1.msra.mxu0 0.0
        %442 = vmatprep.subr.mxu0 0.0
        %443 = vmatpush1.msra.mxu0 0.0
        %444 = vmatprep.subr.mxu0 0.0
        %445 = vmatpush1.msra.mxu0 0.0
        %446 = vmatprep.subr.mxu0 0.0
        %447 = vmatpush1.msra.mxu0 0.0
        %448 = vmatprep.subr.mxu0 0.0
        %449 = vmatpush1.msra.mxu0 0.0
        %450 = vmatprep.subr.mxu0 0.0
        %451 = vmatpush1.msra.mxu0 0.0
        %452 = vmatprep.subr.mxu0 0.0
        %453 = vmatpush1.msra.mxu0 0.0
        %454 = vmatprep.subr.mxu0 0.0
        %455 = vmatpush1.msra.mxu0 0.0
        %456 = vmatprep.subr.mxu0 0.0
        %457 = vmatpush1.msra.mxu0 0.0
        %458 = vmatprep.subr.mxu0 0.0
        %459 = vmatpush1.msra.mxu0 0.0
        %460 = vmatprep.subr.mxu0 0.0
        %461 = vmatpush1.msra.mxu0 0.0
        %462 = vmatprep.subr.mxu0 0.0
        %463 = vmatpush1.msra.mxu0 0.0
        %464 = vmatprep.subr.mxu0 0.0
        %465 = vmatpush1.msra.mxu0 0.0
        %466 = vmatprep.subr.mxu0 0.0
        %467 = vmatpush1.msra.mxu0 0.0
        %468 = vmatprep.subr.mxu0 0.0
        %469 = vmatpush1.msra.mxu0 0.0
        %470 = vmatprep.subr.mxu0 0.0
        %471 = vmatpush1.msra.mxu0 0.0
        %472 = vmatprep.mubr.f32.mxu0 0.0
        %473 = vmatmul.mubr.f32.gmra.mrb[0].mxu0 %v403
        %v474 = vpop.f32.mrb[0].mxu0
        %v475 = vadd.f32 0.0, %v474
        %v476 = vpop.f32.mrb[0].mxu0
        %v477 = vadd.f32 0.0, %v476
        %478 = vmatprep.mubr.f32.mxu0 0.0
        %479 = vmatmul.mubr.f32.gmra.mrb[0].mxu0 %v406
        %v480 = vpop.f32.mrb[0].mxu0
        %v481 = vadd.f32 0.0, %v480
        %v482 = vpop.f32.mrb[0].mxu0
        %v483 = vadd.f32 0.0, %v482
        %484 = vdwg.mxu0
        %v485 = vadd.f32 %v373, %v475
        %v486 = vadd.f32 %v375, %v477
        %v487 = vadd.f32 %v379, %v481
        %v488 = vadd.f32 %v381, %v483
        %489 = vst [vmem:[%s176] sm:$0xff] %v485
        %490 = vst [vmem:[%s176 + $0x8] sm:$0xff] %v486
        %491 = vst [vmem:[%s176 + $0x10] sm:$0xff] %v487
        %492 = vst [vmem:[%s176 + $0x18] sm:$0xff] %v488
        %s493 = sand.u32 %s75, 1
        %s494 = scalar_lea.sflag [#allocation4], %s493
        %s495 = sand.u32 %s75, 1
        %s496 = smul.addr %s495, 32
        %s497 = scalar_lea.vmem [#allocation7], %s496
        // Predicated region
        $region37: #{tpu_custom_call.1} parent=27 // pred_check
          %p498 = pneg %p85
        $region38: #{tpu_custom_call.1} parent=27 // pred_check_branch
          %500 = sbr.rel (%p498) target = $region40
        $region39: #{tpu_custom_call.1} parent=27 // pred_region
          %s501 = smul.u32 2, %s20
          %s503 = ssub.s32 512, 512
          %504 = vsyncadd %s494, %s503
          %s505 = smul.addr %s501, 2
          %s506 = smul.addr %s505, 128
          %s507 = scalar_lea.hbm %s2, %s506
          %s508 = sshll.u32 %s497, 4
          %s509 = int_to_ptr.vmem [resolvable:$true] %s508
          %514 = dma.vmem_to_hbm [thread:$0]  %s509, 512, %s507, %s494, 256, 256, 16
        $region40: #{tpu_custom_call.1} parent=27 // pred_fallthru
          _
      $region28: #{tpu_custom_call.1} parent=5 // pred_fallthru
        _
      %p515 = scmp.le.s32.totalorder 2, %s15
      // Predicated region
      $region41: #{tpu_custom_call.1} parent=5 // pred_check
        %p516 = pneg %p515
      $region42: #{tpu_custom_call.1} parent=5 // pred_check_branch
        %518 = sbr.rel (%p516) target = $region44
      $region43: #{tpu_custom_call.1} parent=5 // pred_region
        %s519 = ssub.s32 %s15, 2
        // Predicated region
        $region45: #{tpu_custom_call.1} parent=43 // pred_check
          %p520 = pneg %p91
        $region46: #{tpu_custom_call.1} parent=43 // pred_check_branch
          %522 = sbr.rel (%p520) target = $region48
        $region47: #{tpu_custom_call.1} parent=43 // pred_region
          %s523 = sand.u32 %s76, 1
          %s524 = scalar_lea.sflag [#allocation4], %s523
          %s525 = sand.u32 %s76, 1
          %s526 = smul.addr %s525, 32
          %s527 = scalar_lea.vmem [#allocation7], %s526
          %528 = dma.done %s524, 512
        $region48: #{tpu_custom_call.1} parent=43 // pred_fallthru
          _
      $region44: #{tpu_custom_call.1} parent=5 // pred_fallthru
        _
    $region6: #{tpu_custom_call.1} parent=1 // loop_footer
      %s19 = sadd.s32 1, %s15
    $region7: #{tpu_custom_call.1} parent=1 // loop_footer_branch
      %14 = sbr.rel target = $region3
    $region8: #{tpu_custom_call.1} parent=1 // loop_exit
      _
    %529 = vsyncpa [#allocation3], 1
    %s530 = scalar_lea.sflag [#allocation3], 1
    %531 = vsyncpa %s530, 1
    %532 = vsyncpa [#allocation6], 1
    %533 = vsyncpa [#allocation4], 1
    %s534 = scalar_lea.sflag [#allocation4], 1
    %535 = vsyncpa %s534, 1

</llo_original>
